<compile_context>
chip_gen: v6e
topology: v6e:2x2x1
jax: 0.10.0
libtpu: 0.0.40
codegen_flags: <defaults>
</compile_context>

<pallas_src>
import jax
import jax.numpy as jnp
from jax import lax
from jax.experimental import pallas as pl
from jax.experimental.pallas import tpu as pltpu

CHUNK = 256      # lanes per inner step: (32, CHUNK) f32 = 8 vregs, stays in-register
TB_MIN = 256     # minimum lane-dense grid tile (multiple of 128 and of CHUNK)
TB_MAX = 2048    # cap so big batches keep >= 2 grid steps (v7x two TensorCores)


def fcv_kernel(x_ref, w1_ref, b1_ref, w2_ref, b2_ref, w3_ref, b3_ref, o_ref):
    # Weights/biases are VMEM-resident across grid steps; load once per step.
    w1 = w1_ref[...]          # (32, D_pad)  PyTorch (out, in) layout, K zero-padded
    b1 = b1_ref[...]          # (32, 1)
    w2 = w2_ref[...]          # (32, 32)
    b2 = b2_ref[...]          # (32, 1)
    w3 = w3_ref[...]          # (32, 1)      column = output_layer.weight.T
    b3 = b3_ref[0, 0]         # scalar in SMEM

    tb = x_ref.shape[1]
    n_chunks = tb // CHUNK    # static

    def chunk_body(c, carry):
        off = pl.multiple_of(c * CHUNK, CHUNK)
        xc = x_ref[:, pl.ds(off, CHUNK)]                       # (D_pad, CHUNK)

        # linear1 + ReLU on the MXU (K tiny; keeps the VALU slot free).
        h1 = jnp.maximum(
            jnp.dot(w1, xc, preferred_element_type=jnp.float32) + b1, 0.0)
        # linear2 (32x32) + ReLU on the MXU.
        h2 = jnp.maximum(
            jnp.dot(w2, h1, preferred_element_type=jnp.float32) + b2, 0.0)
        # Output layer (N = 1): VPU multiply + sublane (XLU) reduction
        # -> lane-dense (1, CHUNK) row, unmasked stores.
        out = jnp.sum(w3 * h2, axis=0, keepdims=True) + b3
        o_ref[:, pl.ds(off, CHUNK)] = out.astype(o_ref.dtype)
        return carry

    lax.fori_loop(0, n_chunks, chunk_body, 0, unroll=True)


def _pick_tile(batch):
    """Grow the lane tile with the batch, but keep >= 2 grid steps when large."""
    tb = TB_MIN
    while tb < TB_MAX and batch > 2 * tb:
        tb *= 2
    return tb


def fcv_forward(states, w1, b1, w2, b2, w3, b3, *, tb=None):
    """states: (B, input_dim) float32 -> (B, 1) float32 (matches FCV.forward)."""
    B, D = states.shape
    H = w1.shape[0]
    if tb is None:
        tb = _pick_tile(B)
    assert tb % CHUNK == 0 and tb % 128 == 0

    d_pad = ((D + 7) // 8) * 8               # pad K to the f32 sublane tile
    b_pad = ((B + tb - 1) // tb) * tb
    grid = (b_pad // tb,)

    # Batch on lanes; zero-pad both K and batch.  Under jit the transpose+pad
    # fuses into a single producer copy (cheapest on v5e's HBM).
    x_t = jnp.pad(states.T.astype(jnp.float32),
                  ((0, d_pad - D), (0, b_pad - B)))
    w1_p = jnp.pad(w1.astype(jnp.float32), ((0, 0), (0, d_pad - D)))

    out_t = pl.pallas_call(
        fcv_kernel,
        out_shape=jax.ShapeDtypeStruct((1, b_pad), jnp.float32),
        grid=grid,
        in_specs=[
            pl.BlockSpec((d_pad, tb), lambda i: (0, i)),          # x tile, pipelined
            pl.BlockSpec((H, d_pad), lambda i: (0, 0)),           # w1 (padded K)
            pl.BlockSpec((H, 1), lambda i: (0, 0)),               # b1
            pl.BlockSpec((H, H), lambda i: (0, 0)),               # w2
            pl.BlockSpec((H, 1), lambda i: (0, 0)),               # b2
            pl.BlockSpec((H, 1), lambda i: (0, 0)),               # w3 column
            pl.BlockSpec(memory_space=pltpu.MemorySpace.SMEM),    # b3 scalar
        ],
        out_specs=pl.BlockSpec((1, tb), lambda i: (0, i)),
        compiler_params=pltpu.CompilerParams(
            dimension_semantics=("parallel",),
        ),
    )(x_t, w1_p, b1, w2, b2, w3, b3)

    return out_t[0, :B].reshape(B, 1)


def init_params(key, input_dim, hidden=32):
    # Mimics PyTorch nn.Linear default init: uniform(-1/sqrt(fan_in), +).
    ks = jax.random.split(key, 6)

    def lin(kw, kb, fan_in, fan_out):
        bound = fan_in ** -0.5
        w = jax.random.uniform(kw, (fan_out, fan_in), jnp.float32, -bound, bound)
        b = jax.random.uniform(kb, (fan_out, 1), jnp.float32, -bound, bound)
        return w, b

    w1, b1 = lin(ks[0], ks[1], input_dim, hidden)   # (32, D), (32, 1)
    w2, b2 = lin(ks[2], ks[3], hidden, hidden)      # (32, 32), (32, 1)
    w3_row, b3 = lin(ks[4], ks[5], hidden, 1)       # (1, 32),  (1, 1)
    w3 = w3_row.T                                   # (32, 1) column for kernel
    return w1, b1, w2, b2, w3, b3


def fcv_reference(states, w1, b1, w2, b2, w3, b3):
    h1 = jnp.maximum(states @ w1.T + b1.T, 0.0)
    h2 = jnp.maximum(h1 @ w2.T + b2.T, 0.0)
    return h2 @ w3 + b3


if __name__ == "__main__":
    key = jax.random.PRNGKey(0)
    k_x, k_p = jax.random.split(key)

    B, input_dim = 8, 4  # CartPole observation dim = 4
    states = jax.random.normal(k_x, (B, input_dim), jnp.float32)
    params = init_params(k_p, input_dim)

    fcv_jit = jax.jit(fcv_forward)
    out = jax.block_until_ready(fcv_jit(states, *params))
    ref = fcv_reference(states, *params)

    assert out.shape == (B, 1)
    assert jnp.allclose(out, ref, atol=1e-4, rtol=1e-4)

    print("KERNEL_OK")
</pallas_src>

<mosaic_0001>
module attributes {stable_mosaic.version = 11 : i64} {
  func.func @fcv_kernel(%arg0: i32, %arg1: memref<8x256xf32, #tpu.memory_space<vmem>>, %arg2: memref<32x8xf32, #tpu.memory_space<vmem>>, %arg3: memref<32x1xf32, #tpu.memory_space<vmem>>, %arg4: memref<32x32xf32, #tpu.memory_space<vmem>>, %arg5: memref<32x1xf32, #tpu.memory_space<vmem>>, %arg6: memref<32x1xf32, #tpu.memory_space<vmem>>, %arg7: memref<1x1xf32, #tpu.memory_space<smem>>, %arg8: memref<1x256xf32, #tpu.memory_space<vmem>>) attributes {dimension_semantics = [#tpu.dimension_semantics<parallel>], iteration_bounds = array<i64: 1>, scalar_prefetch = 0 : i64, scratch_operands = 0 : i64, tpu.core_type = #tpu.core_type<tc>, window_params = [{transform_indices = @transform_0, window_bounds = array<i64: 8, 256>}, {pipeline_mode = #tpu.pipeline_mode<synchronous>, transform_indices = @transform_1, window_bounds = array<i64: 32, 8>}, {pipeline_mode = #tpu.pipeline_mode<synchronous>, transform_indices = @transform_2, window_bounds = array<i64: 32, 1>}, {pipeline_mode = #tpu.pipeline_mode<synchronous>, transform_indices = @transform_3, window_bounds = array<i64: 32, 32>}, {pipeline_mode = #tpu.pipeline_mode<synchronous>, transform_indices = @transform_4, window_bounds = array<i64: 32, 1>}, {pipeline_mode = #tpu.pipeline_mode<synchronous>, transform_indices = @transform_5, window_bounds = array<i64: 32, 1>}, {transform_indices = @transform_6, window_bounds = array<i64: 1, 1>}, {transform_indices = @transform_7, window_bounds = array<i64: 1, 256>}]} {
    %c0 = arith.constant 0 : index
    %c0_0 = arith.constant 0 : index
    %0 = vector.load %arg2[%c0, %c0_0] : memref<32x8xf32, #tpu.memory_space<vmem>>, vector<32x8xf32>
    %c0_1 = arith.constant 0 : index
    %c0_2 = arith.constant 0 : index
    %1 = vector.load %arg3[%c0_1, %c0_2] : memref<32x1xf32, #tpu.memory_space<vmem>>, vector<32x1xf32>
    %c0_3 = arith.constant 0 : index
    %c0_4 = arith.constant 0 : index
    %2 = vector.load %arg4[%c0_3, %c0_4] : memref<32x32xf32, #tpu.memory_space<vmem>>, vector<32x32xf32>
    %c0_5 = arith.constant 0 : index
    %c0_6 = arith.constant 0 : index
    %3 = vector.load %arg5[%c0_5, %c0_6] : memref<32x1xf32, #tpu.memory_space<vmem>>, vector<32x1xf32>
    %c0_7 = arith.constant 0 : index
    %c0_8 = arith.constant 0 : index
    %4 = vector.load %arg6[%c0_7, %c0_8] : memref<32x1xf32, #tpu.memory_space<vmem>>, vector<32x1xf32>
    %c0_9 = arith.constant 0 : index
    %c0_10 = arith.constant 0 : index
    %5 = memref.load %arg7[%c0_9, %c0_10] : memref<1x1xf32, #tpu.memory_space<smem>>
    %c0_i32 = arith.constant 0 : i32
    %c256_i32 = arith.constant 256 : i32
    %6 = arith.muli %c0_i32, %c256_i32 : i32
    %7 = tpu.assume_multiple %6, 256 : i32
    %c0_11 = arith.constant 0 : index
    %8 = arith.index_cast %7 : i32 to index
    %9 = vector.load %arg1[%c0_11, %8] : memref<8x256xf32, #tpu.memory_space<vmem>>, vector<8x256xf32>
    %cst = arith.constant dense<0.000000e+00> : vector<32x256xf32>
    %10 = tpu.matmul %0, %9, %cst {dimension_numbers = #tpu.dot_dimension_numbers<[1], [0], [0], [1], [0, 0, 1, 1], [], []>} : vector<32x8xf32>, vector<8x256xf32>, vector<32x256xf32> -> vector<32x256xf32>
    %11 = vector.broadcast %1 : vector<32x1xf32> to vector<32x256xf32>
    %12 = arith.addf %10, %11 : vector<32x256xf32>
    %cst_12 = arith.constant 0.000000e+00 : f32
    %13 = vector.broadcast %cst_12 : f32 to vector<32x256xf32>
    %14 = arith.maximumf %12, %13 : vector<32x256xf32>
    %cst_13 = arith.constant dense<0.000000e+00> : vector<32x256xf32>
    %15 = tpu.matmul %2, %14, %cst_13 {dimension_numbers = #tpu.dot_dimension_numbers<[1], [0], [0], [1], [0, 0, 1, 1], [], []>} : vector<32x32xf32>, vector<32x256xf32>, vector<32x256xf32> -> vector<32x256xf32>
    %16 = vector.broadcast %3 : vector<32x1xf32> to vector<32x256xf32>
    %17 = arith.addf %15, %16 : vector<32x256xf32>
    %cst_14 = arith.constant 0.000000e+00 : f32
    %18 = vector.broadcast %cst_14 : f32 to vector<32x256xf32>
    %19 = arith.maximumf %17, %18 : vector<32x256xf32>
    %20 = vector.broadcast %4 : vector<32x1xf32> to vector<32x256xf32>
    %21 = arith.mulf %20, %19 : vector<32x256xf32>
    %cst_15 = arith.constant dense<0.000000e+00> : vector<256xf32>
    %22 = vector.multi_reduction <add>, %21, %cst_15 [0] : vector<32x256xf32> to vector<256xf32>
    %23 = vector.shape_cast %22 : vector<256xf32> to vector<1x256xf32>
    %24 = vector.broadcast %5 : f32 to vector<1x256xf32>
    %25 = arith.addf %23, %24 : vector<1x256xf32>
    %c0_16 = arith.constant 0 : index
    %26 = arith.index_cast %7 : i32 to index
    %27 = vector.load %arg8[%c0_16, %26] : memref<1x256xf32, #tpu.memory_space<vmem>>, vector<1x256xf32>
    tpu.vector_store %arg8[%c0_16, %26], %25 {strides = array<i32>} : memref<1x256xf32, #tpu.memory_space<vmem>>, vector<1x256xf32>,
    %c1_i32 = arith.constant 1 : i32
    return
  }
  func.func @transform_0(%arg0: i32) -> (i32, i32) {
    %c0_i32 = arith.constant 0 : i32
    %c0_i32_0 = arith.constant 0 : i32
    return %c0_i32, %arg0 : i32, i32
  }
  func.func @transform_1(%arg0: i32) -> (i32, i32) {
    %c0_i32 = arith.constant 0 : i32
    %c0_i32_0 = arith.constant 0 : i32
    %c0_i32_1 = arith.constant 0 : i32
    return %c0_i32, %c0_i32_0 : i32, i32
  }
  func.func @transform_2(%arg0: i32) -> (i32, i32) {
    %c0_i32 = arith.constant 0 : i32
    %c0_i32_0 = arith.constant 0 : i32
    %c0_i32_1 = arith.constant 0 : i32
    return %c0_i32, %c0_i32_0 : i32, i32
  }
  func.func @transform_3(%arg0: i32) -> (i32, i32) {
    %c0_i32 = arith.constant 0 : i32
    %c0_i32_0 = arith.constant 0 : i32
    %c0_i32_1 = arith.constant 0 : i32
    return %c0_i32, %c0_i32_0 : i32, i32
  }
  func.func @transform_4(%arg0: i32) -> (i32, i32) {
    %c0_i32 = arith.constant 0 : i32
    %c0_i32_0 = arith.constant 0 : i32
    %c0_i32_1 = arith.constant 0 : i32
    return %c0_i32, %c0_i32_0 : i32, i32
  }
  func.func @transform_5(%arg0: i32) -> (i32, i32) {
    %c0_i32 = arith.constant 0 : i32
    %c0_i32_0 = arith.constant 0 : i32
    %c0_i32_1 = arith.constant 0 : i32
    return %c0_i32, %c0_i32_0 : i32, i32
  }
  func.func @transform_6(%arg0: i32) -> (i32, i32) {
    %c0_i32 = arith.constant 0 : i32
    %c0_i32_0 = arith.constant 0 : i32
    %c0_i32_1 = arith.constant 0 : i32
    return %c0_i32, %c0_i32_0 : i32, i32
  }
  func.func @transform_7(%arg0: i32) -> (i32, i32) {
    %c0_i32 = arith.constant 0 : i32
    %c0_i32_0 = arith.constant 0 : i32
    return %c0_i32, %arg0 : i32, i32
  }
}

</mosaic_0001>

<llo_original>
// kernel: fcv_forward.1
$region0: #{fcv_forward.1}
  #allocation0 [shape = 'u32[]', space=smem, size = 0x4, offset = 0x4, fixed_abs, tag = 'smem constant byte address 0x4 - core index']
  #allocation1 [shape = 'u32[144,128]{1,0:T(1,128)}', space=vmem, size = 0x12000, scoped, tag = 'internal scratch']
  #allocation2 [shape = 'f32[1,1]{1,0:T(1,128)S(6)}', space=smem, size = 0x200, scoped, tag = 'scoped memory for fcv_forward.1']
  %s0 = inlined_call_operand.vmem [shape: f32[8,256], index: 0, kind: input, shape index: {}]
  %s1 = inlined_call_operand.vmem [shape: f32[32,8], index: 1, kind: input, shape index: {}]
  %s2 = inlined_call_operand.vmem [shape: f32[32,1], index: 2, kind: input, shape index: {}]
  %s3 = inlined_call_operand.vmem [shape: f32[32,32], index: 3, kind: input, shape index: {}]
  %s4 = inlined_call_operand.vmem [shape: f32[32,1], index: 4, kind: input, shape index: {}]
  %s5 = inlined_call_operand.vmem [shape: f32[32,1], index: 5, kind: input, shape index: {}]
  %s6 = inlined_call_operand.<no memory space> [shape: f32[1,1], index: 6, kind: input, shape index: {}]
  %s7 = inlined_call_operand.vmem [shape: f32[1,256], index: 7, kind: output, shape index: {}]
  %s8 = sld [smem:[#allocation0]]
  $region38: #{fcv_forward.1} parent=0
    _
  %s10 = ssub.s32 1, %s8
  %s11 = scalar_select 0, %s10, %s8
  %12 = sst [smem:[#allocation2]] %s6
  // Predicated region
  $region2: #{fcv_forward.1} parent=0 // pred_check
    _
  $region3: #{fcv_forward.1} parent=0 // pred_check_branch
    %14 = sbr.rel (0) target = $region5
  $region4: #{fcv_forward.1} parent=0 // pred_region
    _
  $region5: #{fcv_forward.1} parent=0 // pred_fallthru
    _
  // Predicated region
  $region6: #{fcv_forward.1} parent=0 // pred_check
    _
  $region7: #{fcv_forward.1} parent=0 // pred_check_branch
    %16 = sbr.rel (0) target = $region9
  $region8: #{fcv_forward.1} parent=0 // pred_region
    _
  $region9: #{fcv_forward.1} parent=0 // pred_fallthru
    _
  // Predicated region
  $region10: #{fcv_forward.1} parent=0 // pred_check
    _
  $region11: #{fcv_forward.1} parent=0 // pred_check_branch
    %18 = sbr.rel (0) target = $region13
  $region12: #{fcv_forward.1} parent=0 // pred_region
    _
  $region13: #{fcv_forward.1} parent=0 // pred_fallthru
    _
  // Predicated region
  $region14: #{fcv_forward.1} parent=0 // pred_check
    _
  $region15: #{fcv_forward.1} parent=0 // pred_check_branch
    %20 = sbr.rel (0) target = $region17
  $region16: #{fcv_forward.1} parent=0 // pred_region
    _
  $region17: #{fcv_forward.1} parent=0 // pred_fallthru
    _
  // Predicated region
  $region18: #{fcv_forward.1} parent=0 // pred_check
    _
  $region19: #{fcv_forward.1} parent=0 // pred_check_branch
    %22 = sbr.rel (0) target = $region21
  $region20: #{fcv_forward.1} parent=0 // pred_region
    _
  $region21: #{fcv_forward.1} parent=0 // pred_fallthru
    _
  // Predicated region
  $region22: #{fcv_forward.1} parent=0 // pred_check
    _
  $region23: #{fcv_forward.1} parent=0 // pred_check_branch
    %24 = sbr.rel (0) target = $region25
  $region24: #{fcv_forward.1} parent=0 // pred_region
    _
  $region25: #{fcv_forward.1} parent=0 // pred_fallthru
    _
  // Predicated region
  $region26: #{fcv_forward.1} parent=0 // pred_check
    _
  $region27: #{fcv_forward.1} parent=0 // pred_check_branch
    %26 = sbr.rel (0) target = $region29
  $region28: #{fcv_forward.1} parent=0 // pred_region
    _
  $region29: #{fcv_forward.1} parent=0 // pred_fallthru
    _
  %v27 = vld [vmem:[%s1] sm:$0xff]
  %v28 = vld [vmem:[%s1 + $0x8] sm:$0xff]
  %v29 = vld [vmem:[%s1 + $0x10] sm:$0xff]
  %v30 = vld [vmem:[%s1 + $0x18] sm:$0xff]
  %v31 = vld [vmem:[%s2] sm:$0xff]
  %v32 = vld [vmem:[%s2 + $0x8] sm:$0xff]
  %v33 = vld [vmem:[%s2 + $0x10] sm:$0xff]
  %v34 = vld [vmem:[%s2 + $0x18] sm:$0xff]
  %v35 = vld [vmem:[%s3] sm:$0xff]
  %v36 = vld [vmem:[%s3 + $0x8] sm:$0xff]
  %v37 = vld [vmem:[%s3 + $0x10] sm:$0xff]
  %v38 = vld [vmem:[%s3 + $0x18] sm:$0xff]
  %v39 = vld [vmem:[%s4] sm:$0xff]
  %v40 = vld [vmem:[%s4 + $0x8] sm:$0xff]
  %v41 = vld [vmem:[%s4 + $0x10] sm:$0xff]
  %v42 = vld [vmem:[%s4 + $0x18] sm:$0xff]
  %v43 = vld [vmem:[%s5] sm:$0xff]
  %v44 = vld [vmem:[%s5 + $0x8] sm:$0xff]
  %v45 = vld [vmem:[%s5 + $0x10] sm:$0xff]
  %v46 = vld [vmem:[%s5 + $0x18] sm:$0xff]
  %s47 = sld [smem:[#allocation2]]
  %v48 = vld [vmem:[%s0] sm:$0xff]
  %v49 = vld [vmem:[%s0 + $0x8] sm:$0xff]
  %51 = vset.pattern.permute.xlu0 0
  %52 = vperm.xlu0 %51, %v31
  %v53 = vpop.permute.xlu0 %52
  %56 = vset.pattern.permute.xlu0 0
  %57 = vperm.xlu0 %56, %v32
  %v58 = vpop.permute.xlu0 %57
  %61 = vset.pattern.permute.xlu0 0
  %62 = vperm.xlu0 %61, %v33
  %v63 = vpop.permute.xlu0 %62
  %66 = vset.pattern.permute.xlu0 0
  %67 = vperm.xlu0 %66, %v34
  %v68 = vpop.permute.xlu0 %67
  %vm70 = vcmask 64512
  %v72 = vsel %vm70, %v27, 0
  %v75 = vsel %vm70, %v28, 0
  %v78 = vsel %vm70, %v29, 0
  %v81 = vsel %vm70, %v30, 0
  %83 = vmatprep.subr.mxu0 0.0
  %84 = vmatpush1.msra.mxu0 0.0
  %85 = vmatprep.subr.mxu0 0.0
  %86 = vmatpush1.msra.mxu0 0.0
  %87 = vmatprep.subr.mxu0 0.0
  %88 = vmatpush1.msra.mxu0 0.0
  %89 = vmatprep.subr.mxu0 0.0
  %90 = vmatpush1.msra.mxu0 0.0
  %91 = vmatprep.subr.mxu0 0.0
  %92 = vmatpush1.msra.mxu0 0.0
  %93 = vmatprep.subr.mxu0 0.0
  %94 = vmatpush1.msra.mxu0 0.0
  %95 = vmatprep.subr.mxu0 0.0
  %96 = vmatpush1.msra.mxu0 0.0
  %97 = vmatprep.subr.mxu0 0.0
  %98 = vmatpush1.msra.mxu0 0.0
  %99 = vmatprep.subr.mxu0 0.0
  %100 = vmatpush1.msra.mxu0 0.0
  %101 = vmatprep.subr.mxu0 0.0
  %102 = vmatpush1.msra.mxu0 0.0
  %103 = vmatprep.subr.mxu0 0.0
  %104 = vmatpush1.msra.mxu0 0.0
  %105 = vmatprep.subr.mxu0 0.0
  %106 = vmatpush1.msra.mxu0 0.0
  %107 = vmatprep.subr.mxu0 0.0
  %108 = vmatpush1.msra.mxu0 0.0
  %109 = vmatprep.subr.mxu0 0.0
  %110 = vmatpush1.msra.mxu0 0.0
  %111 = vmatprep.subr.mxu0 0.0
  %112 = vmatpush1.msra.mxu0 0.0
  %113 = vmatprep.subr.mxu0 %v49
  %114 = vmatpush1.msra.mxu0 %v48
  %115 = vmatprep.subr.mxu0 0.0
  %116 = vmatpush2.msra.mxu0 0.0
  %117 = vmatprep.subr.mxu0 0.0
  %118 = vmatpush2.msra.mxu0 0.0
  %119 = vmatprep.subr.mxu0 0.0
  %120 = vmatpush2.msra.mxu0 0.0
  %121 = vmatprep.subr.mxu0 0.0
  %122 = vmatpush2.msra.mxu0 0.0
  %123 = vmatprep.subr.mxu0 0.0
  %124 = vmatpush2.msra.mxu0 0.0
  %125 = vmatprep.subr.mxu0 0.0
  %126 = vmatpush2.msra.mxu0 0.0
  %127 = vmatprep.subr.mxu0 0.0
  %128 = vmatpush2.msra.mxu0 0.0
  %129 = vmatprep.subr.mxu0 0.0
  %130 = vmatpush2.msra.mxu0 0.0
  %131 = vmatprep.subr.mxu0 0.0
  %132 = vmatpush2.msra.mxu0 0.0
  %133 = vmatprep.subr.mxu0 0.0
  %134 = vmatpush2.msra.mxu0 0.0
  %135 = vmatprep.subr.mxu0 0.0
  %136 = vmatpush2.msra.mxu0 0.0
  %137 = vmatprep.subr.mxu0 0.0
  %138 = vmatpush2.msra.mxu0 0.0
  %139 = vmatprep.subr.mxu0 0.0
  %140 = vmatpush2.msra.mxu0 0.0
  %141 = vmatprep.subr.mxu0 0.0
  %142 = vmatpush2.msra.mxu0 0.0
  %143 = vmatprep.subr.mxu0 0.0
  %144 = vmatpush2.msra.mxu0 0.0
  %145 = vmatprep.subr.mxu0 0.0
  %146 = vmatpush2.msra.mxu0 0.0
  %147 = vmatprep.mubr.f32.mxu0 0.0
  %148 = vmatmul.mubr.f32.gmra.mxu0 %v72
  %v149 = vpop.f32.mrf.mxu0
  %v150 = vadd.f32 %v53, %v149
  %v151 = vpop.f32.mrf.mxu0
  %v152 = vadd.f32 %v53, %v151
  %153 = vmatprep.mubr.f32.mxu0 0.0
  %154 = vmatmul.mubr.f32.gmra.mxu0 %v75
  %v155 = vpop.f32.mrf.mxu0
  %v156 = vadd.f32 %v58, %v155
  %v157 = vpop.f32.mrf.mxu0
  %v158 = vadd.f32 %v58, %v157
  %159 = vmatprep.mubr.f32.mxu0 0.0
  %160 = vmatmul.mubr.f32.gmra.mxu0 %v78
  %v161 = vpop.f32.mrf.mxu0
  %v162 = vadd.f32 %v63, %v161
  %v163 = vpop.f32.mrf.mxu0
  %v164 = vadd.f32 %v63, %v163
  %165 = vmatprep.mubr.f32.mxu0 0.0
  %166 = vmatmul.mubr.f32.gmra.mxu0 %v81
  %v167 = vpop.f32.mrf.mxu0
  %v168 = vadd.f32 %v68, %v167
  %v169 = vpop.f32.mrf.mxu0
  %v170 = vadd.f32 %v68, %v169
  %171 = vdwg.mxu0
  %v172 = vmax.f32 %v150, 0.0
  %v173 = vmax.f32 %v152, 0.0
  %v174 = vmax.f32 %v156, 0.0
  %v175 = vmax.f32 %v158, 0.0
  %v176 = vmax.f32 %v162, 0.0
  %v177 = vmax.f32 %v164, 0.0
  %v178 = vmax.f32 %v168, 0.0
  %v179 = vmax.f32 %v170, 0.0
  %181 = vset.pattern.permute.xlu0 0
  %182 = vperm.xlu0 %181, %v39
  %v183 = vpop.permute.xlu0 %182
  %186 = vset.pattern.permute.xlu0 0
  %187 = vperm.xlu0 %186, %v40
  %v188 = vpop.permute.xlu0 %187
  %191 = vset.pattern.permute.xlu0 0
  %192 = vperm.xlu0 %191, %v41
  %v193 = vpop.permute.xlu0 %192
  %196 = vset.pattern.permute.xlu0 0
  %197 = vperm.xlu0 %196, %v42
  %v198 = vpop.permute.xlu0 %197
  %vm200 = vcmask 261120
  %v202 = vsel %vm200, %v35, 0
  %v205 = vsel %vm200, %v36, 0
  %v208 = vsel %vm200, %v37, 0
  %v211 = vsel %vm200, %v38, 0
  %213 = vmatprep.subr.mxu0 0.0
  %214 = vmatpush1.msra.mxu0 0.0
  %215 = vmatprep.subr.mxu0 0.0
  %216 = vmatpush1.msra.mxu0 0.0
  %217 = vmatprep.subr.mxu0 0.0
  %218 = vmatpush1.msra.mxu0 0.0
  %219 = vmatprep.subr.mxu0 0.0
  %220 = vmatpush1.msra.mxu0 0.0
  %221 = vmatprep.subr.mxu0 0.0
  %222 = vmatpush1.msra.mxu0 0.0
  %223 = vmatprep.subr.mxu0 0.0
  %224 = vmatpush1.msra.mxu0 0.0
  %225 = vmatprep.subr.mxu0 0.0
  %226 = vmatpush1.msra.mxu0 0.0
  %227 = vmatprep.subr.mxu0 0.0
  %228 = vmatpush1.msra.mxu0 0.0
  %229 = vmatprep.subr.mxu0 0.0
  %230 = vmatpush1.msra.mxu0 0.0
  %231 = vmatprep.subr.mxu0 0.0
  %232 = vmatpush1.msra.mxu0 0.0
  %233 = vmatprep.subr.mxu0 0.0
  %234 = vmatpush1.msra.mxu0 0.0
  %235 = vmatprep.subr.mxu0 0.0
  %236 = vmatpush1.msra.mxu0 0.0
  %237 = vmatprep.subr.mxu0 %v179
  %238 = vmatpush1.msra.mxu0 %v178
  %239 = vmatprep.subr.mxu0 %v177
  %240 = vmatpush1.msra.mxu0 %v176
  %241 = vmatprep.subr.mxu0 %v175
  %242 = vmatpush1.msra.mxu0 %v174
  %243 = vmatprep.subr.mxu0 %v173
  %244 = vmatpush1.msra.mxu0 %v172
  %245 = vmatprep.subr.mxu0 0.0
  %246 = vmatpush2.msra.mxu0 0.0
  %247 = vmatprep.subr.mxu0 0.0
  %248 = vmatpush2.msra.mxu0 0.0
  %249 = vmatprep.subr.mxu0 0.0
  %250 = vmatpush2.msra.mxu0 0.0
  %251 = vmatprep.subr.mxu0 0.0
  %252 = vmatpush2.msra.mxu0 0.0
  %253 = vmatprep.subr.mxu0 0.0
  %254 = vmatpush2.msra.mxu0 0.0
  %255 = vmatprep.subr.mxu0 0.0
  %256 = vmatpush2.msra.mxu0 0.0
  %257 = vmatprep.subr.mxu0 0.0
  %258 = vmatpush2.msra.mxu0 0.0
  %259 = vmatprep.subr.mxu0 0.0
  %260 = vmatpush2.msra.mxu0 0.0
  %261 = vmatprep.subr.mxu0 0.0
  %262 = vmatpush2.msra.mxu0 0.0
  %263 = vmatprep.subr.mxu0 0.0
  %264 = vmatpush2.msra.mxu0 0.0
  %265 = vmatprep.subr.mxu0 0.0
  %266 = vmatpush2.msra.mxu0 0.0
  %267 = vmatprep.subr.mxu0 0.0
  %268 = vmatpush2.msra.mxu0 0.0
  %269 = vmatprep.subr.mxu0 0.0
  %270 = vmatpush2.msra.mxu0 0.0
  %271 = vmatprep.subr.mxu0 0.0
  %272 = vmatpush2.msra.mxu0 0.0
  %273 = vmatprep.subr.mxu0 0.0
  %274 = vmatpush2.msra.mxu0 0.0
  %275 = vmatprep.subr.mxu0 0.0
  %276 = vmatpush2.msra.mxu0 0.0
  %277 = vmatprep.mubr.f32.mxu0 0.0
  %278 = vmatmul.mubr.f32.gmra.mxu0 %v202
  %v279 = vpop.f32.mrf.mxu0
  %v280 = vadd.f32 %v183, %v279
  %v281 = vpop.f32.mrf.mxu0
  %v282 = vadd.f32 %v183, %v281
  %283 = vmatprep.mubr.f32.mxu0 0.0
  %284 = vmatmul.mubr.f32.gmra.mxu0 %v205
  %v285 = vpop.f32.mrf.mxu0
  %v286 = vadd.f32 %v188, %v285
  %v287 = vpop.f32.mrf.mxu0
  %v288 = vadd.f32 %v188, %v287
  %289 = vmatprep.mubr.f32.mxu0 0.0
  %290 = vmatmul.mubr.f32.gmra.mxu0 %v208
  %v291 = vpop.f32.mrf.mxu0
  %v292 = vadd.f32 %v193, %v291
  %v293 = vpop.f32.mrf.mxu0
  %v294 = vadd.f32 %v193, %v293
  %295 = vmatprep.mubr.f32.mxu0 0.0
  %296 = vmatmul.mubr.f32.gmra.mxu0 %v211
  %v297 = vpop.f32.mrf.mxu0
  %v298 = vadd.f32 %v198, %v297
  %v299 = vpop.f32.mrf.mxu0
  %v300 = vadd.f32 %v198, %v299
  %301 = vdwg.mxu0
  %v302 = vmax.f32 %v280, 0.0
  %v303 = vmax.f32 %v282, 0.0
  %v304 = vmax.f32 %v286, 0.0
  %v305 = vmax.f32 %v288, 0.0
  %v306 = vmax.f32 %v292, 0.0
  %v307 = vmax.f32 %v294, 0.0
  %v308 = vmax.f32 %v298, 0.0
  %v309 = vmax.f32 %v300, 0.0
  %311 = vset.pattern.permute.xlu0 0
  %312 = vperm.xlu0 %311, %v43
  %v313 = vpop.permute.xlu0 %312
  %316 = vset.pattern.permute.xlu0 0
  %317 = vperm.xlu0 %316, %v44
  %v318 = vpop.permute.xlu0 %317
  %321 = vset.pattern.permute.xlu0 0
  %322 = vperm.xlu0 %321, %v45
  %v323 = vpop.permute.xlu0 %322
  %326 = vset.pattern.permute.xlu0 0
  %327 = vperm.xlu0 %326, %v46
  %v328 = vpop.permute.xlu0 %327
  %v330 = vmul.f32 %v313, %v302
  %v331 = vmul.f32 %v313, %v303
  %v332 = vmul.f32 %v318, %v304
  %v333 = vmul.f32 %v318, %v305
  %v334 = vmul.f32 %v323, %v306
  %v335 = vmul.f32 %v323, %v307
  %v336 = vmul.f32 %v328, %v308
  %v337 = vmul.f32 %v328, %v309
  %v338 = vadd.f32 %v330, %v332
  %v339 = vadd.f32 %v338, %v334
  %v340 = vadd.f32 %v339, %v336
  %v341 = vrot.slane %v340, 4
  %v342 = vadd.f32 %v340, %v341
  %v343 = vrot.slane %v342, 2
  %v344 = vadd.f32 %v342, %v343
  %v345 = vrot.slane %v344, 1
  %v346 = vadd.f32 %v344, %v345
  %v347 = vadd.f32 %v331, %v333
  %v348 = vadd.f32 %v347, %v335
  %v349 = vadd.f32 %v348, %v337
  %v350 = vrot.slane %v349, 4
  %v351 = vadd.f32 %v349, %v350
  %v352 = vrot.slane %v351, 2
  %v353 = vadd.f32 %v351, %v352
  %v354 = vrot.slane %v353, 1
  %v355 = vadd.f32 %v353, %v354
  %v356 = vstv %s47
  %v357 = vadd.f32 %v346, %v356
  %v358 = vadd.f32 %v355, %v356
  %v361 = vcombine.low %v357, %v358
  %v363 = vunpack.c.l.s4 1966171168
  %v364 = vunpack.c.0.s8 %v363
  %v365 = vlaneseq
  %v366 = vshrl.u32 %v365, 7
  %v367 = vsub.s32 %v364, %v366
  %v368 = vrot.slane %v361, %v367
  %v370 = vunpack.c.l.s4 1966171168
  %v371 = vunpack.c.0.s8 %v370
  %v372 = vlaneseq
  %v373 = vshrl.u32 %v372, 7
  %v374 = vsub.s32 %v371, %v373
  %v375 = vrot.slane %v368, %v374
  %v377 = vlaneseq
  %vm378 = vcmp.ge.s32.totalorder %v377, 0
  %vm379 = vcmp.lt.s32.totalorder %v377, 256
  %vm380 = vmand %vm378, %vm379
  %381 = vst.msk [vmem:[%s7] sm:$0x3] %vm380, %v375
  // Predicated region
  $region30: #{fcv_forward.1} parent=0 // pred_check
    _
  $region31: #{fcv_forward.1} parent=0 // pred_check_branch
    %383 = sbr.rel (0) target = $region33
  $region32: #{fcv_forward.1} parent=0 // pred_region
    _
  $region33: #{fcv_forward.1} parent=0 // pred_fallthru
    _
  // Predicated region
  $region34: #{fcv_forward.1} parent=0 // pred_check
    _
  $region35: #{fcv_forward.1} parent=0 // pred_check_branch
    %385 = sbr.rel (0) target = $region37
  $region36: #{fcv_forward.1} parent=0 // pred_region
    _
  $region37: #{fcv_forward.1} parent=0 // pred_fallthru
    _

</llo_original>
